<compile_context>
chip_gen: v5e
topology: v5e:2x2
jax: 0.10.0
libtpu: 0.0.40
codegen_flags: <defaults>
</compile_context>

<pallas_src>
import jax
import jax.numpy as jnp
from jax import lax
from jax.experimental import pallas as pl
from jax.experimental.pallas import tpu as pltpu

LANE = 128


def _round_up(n, m):
    return ((n + m - 1) // m) * m


def _cdiv(a, b):
    return -(-a // b)


def policy_kernel(x_ref,
                  w1_ref, b1_ref,
                  w2_ref, b2_ref,
                  w3_ref, b3_ref,
                  w4_ref, b4_ref,
                  out_ref):
    """Feature-major MLP + softmax for one batch tile.

    x_ref:  [TB, S]      batch-major, as delivered from HBM
    wN_ref: [outN, inN]  transposed weights (bf16, VMEM-resident)
    bN_ref: [outN, 1]    column biases (f32)
    out_ref:[A, TB]      batch on the 128-lane axis -> lane-dense stores
    """
    x = x_ref[...].astype(jnp.bfloat16)                          # [TB, S]

    # Layer 1: contract x's feature axis directly (no explicit x transpose):
    #   h1[o, b] = sum_s w1[o, s] * x[b, s]  -> [64, TB]
    h1 = lax.dot_general(
        w1_ref[...], x, (((1,), (1,)), ((), ())),
        preferred_element_type=jnp.float32) + b1_ref[...]
    # f32 ReLU then cast (portable to v5e, which has no bf16 VPU).
    h1 = jnp.maximum(h1, 0.0).astype(jnp.bfloat16)

    # Layer 2: [32,64] @ [64,TB] -> [32,TB]
    h2 = jnp.dot(w2_ref[...], h1, preferred_element_type=jnp.float32) + b2_ref[...]
    h2 = jnp.maximum(h2, 0.0).astype(jnp.bfloat16)

    # Layer 3: [8,32] @ [32,TB] -> [8,TB]
    h3 = jnp.dot(w3_ref[...], h2, preferred_element_type=jnp.float32) + b3_ref[...]
    h3 = jnp.maximum(h3, 0.0).astype(jnp.bfloat16)

    # Layer 4 (logits): [A,8] @ [8,TB] -> [A,TB], f32
    logits = jnp.dot(w4_ref[...], h3, preferred_element_type=jnp.float32) + b4_ref[...]

    # Numerically-stable softmax over the action axis.  Axis 0 is only A (<=8)
    # sublanes, so the reductions never touch the 128-lane batch axis.
    m = jnp.max(logits, axis=0, keepdims=True)                   # [1, TB]
    e = jnp.exp(logits - m)                                      # [A, TB]
    denom = jnp.sum(e, axis=0, keepdims=True)                    # [1, TB]
    # Exact divide (not approx reciprocal): rows sum to 1 to f32 rounding.
    out_ref[...] = (e / denom).astype(out_ref.dtype)


def policy_network_forward(x, params, *, block_b=2048):
    """PolicyNetwork forward pass: softmax(MLP(x), axis=-1).

    x: [B, state_size] float32
    params: dict with w1..w4 ([in,out]) and b1..b4 ([1,out]) float32 arrays.
    returns: [B, action_size] float32 action probabilities (rows sum to ~1).
    """
    B, S = x.shape
    A = params["w4"].shape[1]

    # --- batch tiling (lane-dense layout: batch on the 128-lane axis) ---
    block_b = max(LANE, _round_up(block_b, LANE))
    b128 = _round_up(B, LANE)
    steps = _cdiv(b128, block_b)
    # Prefer >= 2 grid steps when the batch allows it so the "parallel" grid
    # axis can be sharded across v7x's two TensorCores (no-op on v5e/v6e).
    if steps == 1 and b128 >= 2 * LANE:
        steps = 2
    tb = _round_up(_cdiv(b128, steps), LANE)
    b_pad = tb * steps
    if b_pad != B:
        x = jnp.pad(x, ((0, b_pad - B), (0, 0)))

    # Transposed weights ([out,in], bf16 -> MXU) and column biases ([out,1], f32).
    w = [params[f"w{i}"].T.astype(jnp.bfloat16) for i in range(1, 5)]
    b = [params[f"b{i}"].T.astype(jnp.float32) for i in range(1, 5)]

    def resident(arr):
        # Same block index every grid step -> stays VMEM-resident (no re-DMA).
        return pl.BlockSpec(arr.shape, lambda i: (0, 0))

    in_specs = [pl.BlockSpec((tb, S), lambda i: (i, 0))]
    args = [x]
    for wi, bi in zip(w, b):
        in_specs += [resident(wi), resident(bi)]
        args += [wi, bi]

    out_t = pl.pallas_call(
        policy_kernel,
        out_shape=jax.ShapeDtypeStruct((A, b_pad), jnp.float32),
        grid=(steps,),
        in_specs=in_specs,
        out_specs=pl.BlockSpec((A, tb), lambda i: (0, i)),
        compiler_params=pltpu.CompilerParams(
            dimension_semantics=("parallel",),
            # Portable to v7x's 64 MiB VMEM; raise together with block_b on
            # v6e's 128 MiB VMEM for very large batches.
            vmem_limit_bytes=32 * 1024 * 1024,
        ),
    )(*args)

    # [A, b_pad] -> [B, A]; tiny transpose done by XLA on a small slab.
    return out_t[:, :B].T


def init_params(key, state_size, action_size):
    """Deterministic init mimicking torch.nn.Linear's U(-1/sqrt(fan_in), 1/sqrt(fan_in))."""
    dims = [(state_size, 64), (64, 32), (32, 8), (8, action_size)]
    params = {}
    for i, (fan_in, fan_out) in enumerate(dims, start=1):
        key, kw, kb = jax.random.split(key, 3)
        bound = 1.0 / jnp.sqrt(jnp.float32(fan_in))
        params[f"w{i}"] = jax.random.uniform(
            kw, (fan_in, fan_out), jnp.float32, minval=-bound, maxval=bound)
        params[f"b{i}"] = jax.random.uniform(
            kb, (1, fan_out), jnp.float32, minval=-bound, maxval=bound)
    return params


def _ref_forward(x, p):
    h = jnp.maximum(x @ p["w1"] + p["b1"], 0.0)
    h = jnp.maximum(h @ p["w2"] + p["b2"], 0.0)
    h = jnp.maximum(h @ p["w3"] + p["b3"], 0.0)
    logits = h @ p["w4"] + p["b4"]
    return jax.nn.softmax(logits, axis=-1)


if __name__ == "__main__":
    key = jax.random.PRNGKey(0)

    batch = 2
    state_size = 16
    action_size = 4

    key, kx = jax.random.split(key)
    x = jax.random.normal(kx, (batch, state_size), jnp.float32)

    params = init_params(key, state_size, action_size)

    # Tiny interactive batch (single 128-row padded tile).
    probs = jax.block_until_ready(policy_network_forward(x, params))
    ref = _ref_forward(x, params)
    assert probs.shape == (batch, action_size)
    # exact divide -> row sums to f32 rounding; bf16 matmuls -> ~1e-2 prob error.
    assert jnp.allclose(jnp.sum(probs, axis=-1), 1.0, atol=1e-5)
    assert jnp.allclose(probs, ref, atol=2e-2, rtol=2e-2)

    # Batched rollout-style case exercising the batch grid, multi-step
    # pipelining and ragged-tail padding (B=300 with 128-row tiles -> 3 steps).
    key, kx2 = jax.random.split(key)
    x_big = jax.random.normal(kx2, (300, state_size), jnp.float32)
    probs_big = jax.block_until_ready(
        policy_network_forward(x_big, params, block_b=128))
    ref_big = _ref_forward(x_big, params)
    assert probs_big.shape == (300, action_size)
    assert jnp.allclose(jnp.sum(probs_big, axis=-1), 1.0, atol=1e-5)
    assert jnp.allclose(probs_big, ref_big, atol=2e-2, rtol=2e-2)

    print("KERNEL_OK")
</pallas_src>

<mosaic_0001>
module attributes {stable_mosaic.version = 11 : i64} {
  func.func @policy_kernel(%arg0: i32, %arg1: memref<128x16xf32, #tpu.memory_space<vmem>>, %arg2: memref<64x16xbf16, #tpu.memory_space<vmem>>, %arg3: memref<64x1xf32, #tpu.memory_space<vmem>>, %arg4: memref<32x64xbf16, #tpu.memory_space<vmem>>, %arg5: memref<32x1xf32, #tpu.memory_space<vmem>>, %arg6: memref<8x32xbf16, #tpu.memory_space<vmem>>, %arg7: memref<8x1xf32, #tpu.memory_space<vmem>>, %arg8: memref<4x8xbf16, #tpu.memory_space<vmem>>, %arg9: memref<4x1xf32, #tpu.memory_space<vmem>>, %arg10: memref<4x128xf32, #tpu.memory_space<vmem>>) attributes {dimension_semantics = [#tpu.dimension_semantics<parallel>], iteration_bounds = array<i64: 1>, scalar_prefetch = 0 : i64, scratch_operands = 0 : i64, tpu.core_type = #tpu.core_type<tc>, window_params = [{transform_indices = @transform_0, window_bounds = array<i64: 128, 16>}, {pipeline_mode = #tpu.pipeline_mode<synchronous>, transform_indices = @transform_1, window_bounds = array<i64: 64, 16>}, {pipeline_mode = #tpu.pipeline_mode<synchronous>, transform_indices = @transform_2, window_bounds = array<i64: 64, 1>}, {pipeline_mode = #tpu.pipeline_mode<synchronous>, transform_indices = @transform_3, window_bounds = array<i64: 32, 64>}, {pipeline_mode = #tpu.pipeline_mode<synchronous>, transform_indices = @transform_4, window_bounds = array<i64: 32, 1>}, {pipeline_mode = #tpu.pipeline_mode<synchronous>, transform_indices = @transform_5, window_bounds = array<i64: 8, 32>}, {pipeline_mode = #tpu.pipeline_mode<synchronous>, transform_indices = @transform_6, window_bounds = array<i64: 8, 1>}, {pipeline_mode = #tpu.pipeline_mode<synchronous>, transform_indices = @transform_7, window_bounds = array<i64: 4, 8>}, {pipeline_mode = #tpu.pipeline_mode<synchronous>, transform_indices = @transform_8, window_bounds = array<i64: 4, 1>}, {transform_indices = @transform_9, window_bounds = array<i64: 4, 128>}]} {
    %c0 = arith.constant 0 : index
    %c0_0 = arith.constant 0 : index
    %0 = vector.load %arg1[%c0, %c0_0] : memref<128x16xf32, #tpu.memory_space<vmem>>, vector<128x16xf32>
    %1 = arith.truncf %0 : vector<128x16xf32> to vector<128x16xbf16>
    %c0_1 = arith.constant 0 : index
    %c0_2 = arith.constant 0 : index
    %2 = vector.load %arg2[%c0_1, %c0_2] : memref<64x16xbf16, #tpu.memory_space<vmem>>, vector<64x16xbf16>
    %cst = arith.constant dense<0.000000e+00> : vector<64x128xf32>
    %3 = tpu.matmul %2, %1, %cst {dimension_numbers = #tpu.dot_dimension_numbers<[1], [1], [0], [0], [0, 0, 1, 0], [], []>} : vector<64x16xbf16>, vector<128x16xbf16>, vector<64x128xf32> -> vector<64x128xf32>
    %c0_3 = arith.constant 0 : index
    %c0_4 = arith.constant 0 : index
    %4 = vector.load %arg3[%c0_3, %c0_4] : memref<64x1xf32, #tpu.memory_space<vmem>>, vector<64x1xf32>
    %5 = vector.broadcast %4 : vector<64x1xf32> to vector<64x128xf32>
    %6 = arith.addf %3, %5 : vector<64x128xf32>
    %cst_5 = arith.constant 0.000000e+00 : f32
    %7 = vector.broadcast %cst_5 : f32 to vector<64x128xf32>
    %8 = arith.maximumf %6, %7 : vector<64x128xf32>
    %9 = arith.truncf %8 : vector<64x128xf32> to vector<64x128xbf16>
    %c0_6 = arith.constant 0 : index
    %c0_7 = arith.constant 0 : index
    %10 = vector.load %arg4[%c0_6, %c0_7] : memref<32x64xbf16, #tpu.memory_space<vmem>>, vector<32x64xbf16>
    %cst_8 = arith.constant dense<0.000000e+00> : vector<32x128xf32>
    %11 = tpu.matmul %10, %9, %cst_8 {dimension_numbers = #tpu.dot_dimension_numbers<[1], [0], [0], [1], [0, 0, 1, 1], [], []>} : vector<32x64xbf16>, vector<64x128xbf16>, vector<32x128xf32> -> vector<32x128xf32>
    %c0_9 = arith.constant 0 : index
    %c0_10 = arith.constant 0 : index
    %12 = vector.load %arg5[%c0_9, %c0_10] : memref<32x1xf32, #tpu.memory_space<vmem>>, vector<32x1xf32>
    %13 = vector.broadcast %12 : vector<32x1xf32> to vector<32x128xf32>
    %14 = arith.addf %11, %13 : vector<32x128xf32>
    %cst_11 = arith.constant 0.000000e+00 : f32
    %15 = vector.broadcast %cst_11 : f32 to vector<32x128xf32>
    %16 = arith.maximumf %14, %15 : vector<32x128xf32>
    %17 = arith.truncf %16 : vector<32x128xf32> to vector<32x128xbf16>
    %c0_12 = arith.constant 0 : index
    %c0_13 = arith.constant 0 : index
    %18 = vector.load %arg6[%c0_12, %c0_13] : memref<8x32xbf16, #tpu.memory_space<vmem>>, vector<8x32xbf16>
    %cst_14 = arith.constant dense<0.000000e+00> : vector<8x128xf32>
    %19 = tpu.matmul %18, %17, %cst_14 {dimension_numbers = #tpu.dot_dimension_numbers<[1], [0], [0], [1], [0, 0, 1, 1], [], []>} : vector<8x32xbf16>, vector<32x128xbf16>, vector<8x128xf32> -> vector<8x128xf32>
    %c0_15 = arith.constant 0 : index
    %c0_16 = arith.constant 0 : index
    %20 = vector.load %arg7[%c0_15, %c0_16] : memref<8x1xf32, #tpu.memory_space<vmem>>, vector<8x1xf32>
    %21 = vector.broadcast %20 : vector<8x1xf32> to vector<8x128xf32>
    %22 = arith.addf %19, %21 : vector<8x128xf32>
    %cst_17 = arith.constant 0.000000e+00 : f32
    %23 = vector.broadcast %cst_17 : f32 to vector<8x128xf32>
    %24 = arith.maximumf %22, %23 : vector<8x128xf32>
    %25 = arith.truncf %24 : vector<8x128xf32> to vector<8x128xbf16>
    %c0_18 = arith.constant 0 : index
    %c0_19 = arith.constant 0 : index
    %26 = vector.load %arg8[%c0_18, %c0_19] : memref<4x8xbf16, #tpu.memory_space<vmem>>, vector<4x8xbf16>
    %cst_20 = arith.constant dense<0.000000e+00> : vector<4x128xf32>
    %27 = tpu.matmul %26, %25, %cst_20 {dimension_numbers = #tpu.dot_dimension_numbers<[1], [0], [0], [1], [0, 0, 1, 1], [], []>} : vector<4x8xbf16>, vector<8x128xbf16>, vector<4x128xf32> -> vector<4x128xf32>
    %c0_21 = arith.constant 0 : index
    %c0_22 = arith.constant 0 : index
    %28 = vector.load %arg9[%c0_21, %c0_22] : memref<4x1xf32, #tpu.memory_space<vmem>>, vector<4x1xf32>
    %29 = vector.broadcast %28 : vector<4x1xf32> to vector<4x128xf32>
    %30 = arith.addf %27, %29 : vector<4x128xf32>
    %cst_23 = arith.constant dense<0xFF800000> : vector<128xf32>
    %31 = vector.multi_reduction <maximumf>, %30, %cst_23 [0] : vector<4x128xf32> to vector<128xf32>
    %32 = vector.shape_cast %31 : vector<128xf32> to vector<1x128xf32>
    %33 = vector.broadcast %32 : vector<1x128xf32> to vector<4x128xf32>
    %34 = arith.subf %30, %33 : vector<4x128xf32>
    %35 = math.exp %34 : vector<4x128xf32>
    %cst_24 = arith.constant dense<0.000000e+00> : vector<128xf32>
    %36 = vector.multi_reduction <add>, %35, %cst_24 [0] : vector<4x128xf32> to vector<128xf32>
    %37 = vector.shape_cast %36 : vector<128xf32> to vector<1x128xf32>
    %38 = vector.broadcast %37 : vector<1x128xf32> to vector<4x128xf32>
    %39 = arith.divf %35, %38 : vector<4x128xf32>
    %c0_25 = arith.constant 0 : index
    %c0_26 = arith.constant 0 : index
    %40 = vector.load %arg10[%c0_25, %c0_26] : memref<4x128xf32, #tpu.memory_space<vmem>>, vector<4x128xf32>
    tpu.vector_store %arg10[%c0_25, %c0_26], %39 {strides = array<i32>} : memref<4x128xf32, #tpu.memory_space<vmem>>, vector<4x128xf32>,
    return
  }
  func.func @transform_0(%arg0: i32) -> (i32, i32) {
    %c0_i32 = arith.constant 0 : i32
    %c0_i32_0 = arith.constant 0 : i32
    return %arg0, %c0_i32 : i32, i32
  }
  func.func @transform_1(%arg0: i32) -> (i32, i32) {
    %c0_i32 = arith.constant 0 : i32
    %c0_i32_0 = arith.constant 0 : i32
    %c0_i32_1 = arith.constant 0 : i32
    return %c0_i32, %c0_i32_0 : i32, i32
  }
  func.func @transform_2(%arg0: i32) -> (i32, i32) {
    %c0_i32 = arith.constant 0 : i32
    %c0_i32_0 = arith.constant 0 : i32
    %c0_i32_1 = arith.constant 0 : i32
    return %c0_i32, %c0_i32_0 : i32, i32
  }
  func.func @transform_3(%arg0: i32) -> (i32, i32) {
    %c0_i32 = arith.constant 0 : i32
    %c0_i32_0 = arith.constant 0 : i32
    %c0_i32_1 = arith.constant 0 : i32
    return %c0_i32, %c0_i32_0 : i32, i32
  }
  func.func @transform_4(%arg0: i32) -> (i32, i32) {
    %c0_i32 = arith.constant 0 : i32
    %c0_i32_0 = arith.constant 0 : i32
    %c0_i32_1 = arith.constant 0 : i32
    return %c0_i32, %c0_i32_0 : i32, i32
  }
  func.func @transform_5(%arg0: i32) -> (i32, i32) {
    %c0_i32 = arith.constant 0 : i32
    %c0_i32_0 = arith.constant 0 : i32
    %c0_i32_1 = arith.constant 0 : i32
    return %c0_i32, %c0_i32_0 : i32, i32
  }
  func.func @transform_6(%arg0: i32) -> (i32, i32) {
    %c0_i32 = arith.constant 0 : i32
    %c0_i32_0 = arith.constant 0 : i32
    %c0_i32_1 = arith.constant 0 : i32
    return %c0_i32, %c0_i32_0 : i32, i32
  }
  func.func @transform_7(%arg0: i32) -> (i32, i32) {
    %c0_i32 = arith.constant 0 : i32
    %c0_i32_0 = arith.constant 0 : i32
    %c0_i32_1 = arith.constant 0 : i32
    return %c0_i32, %c0_i32_0 : i32, i32
  }
  func.func @transform_8(%arg0: i32) -> (i32, i32) {
    %c0_i32 = arith.constant 0 : i32
    %c0_i32_0 = arith.constant 0 : i32
    %c0_i32_1 = arith.constant 0 : i32
    return %c0_i32, %c0_i32_0 : i32, i32
  }
  func.func @transform_9(%arg0: i32) -> (i32, i32) {
    %c0_i32 = arith.constant 0 : i32
    %c0_i32_0 = arith.constant 0 : i32
    return %c0_i32, %arg0 : i32, i32
  }
}

</mosaic_0001>

<llo_original>
// kernel: tpu_custom_call.1
$region0: #{tpu_custom_call.1}
  #allocation0 [shape = 'u32[]', space=smem, size = 0x4, offset = 0x4, fixed_abs, tag = 'smem constant byte address 0x4 - core index']
  #allocation1 [shape = 'u32[72,128]{1,0:T(1,128)}', space=vmem, size = 0x9000, scoped, tag = 'internal scratch']
  %s0 = inlined_call_operand.vmem [shape: f32[128,16], index: 0, kind: input, shape index: {}]
  %s1 = inlined_call_operand.vmem [shape: bf16[64,16], index: 1, kind: input, shape index: {}]
  %s2 = inlined_call_operand.vmem [shape: f32[64,1], index: 2, kind: input, shape index: {}]
  %s3 = inlined_call_operand.vmem [shape: bf16[32,64], index: 3, kind: input, shape index: {}]
  %s4 = inlined_call_operand.vmem [shape: f32[32,1], index: 4, kind: input, shape index: {}]
  %s5 = inlined_call_operand.vmem [shape: bf16[8,32], index: 5, kind: input, shape index: {}]
  %s6 = inlined_call_operand.vmem [shape: f32[8,1], index: 6, kind: input, shape index: {}]
  %s7 = inlined_call_operand.vmem [shape: bf16[4,8], index: 7, kind: input, shape index: {}]
  %s8 = inlined_call_operand.vmem [shape: f32[4,1], index: 8, kind: input, shape index: {}]
  %s9 = inlined_call_operand.hbm [shape: f32[4,128], index: 9, kind: output, shape index: {}]
  %s10 = sld [smem:[#allocation0]]
  $region46: #{tpu_custom_call.1} parent=0
    _
  %s12 = ssub.s32 1, %s10
  %s13 = scalar_select 0, %s12, %s10
  $region1: #{tpu_custom_call.1} parent=0
    #allocation2 [shape = 'u8[2048]{0}', space=vmem, size = 0x800, scoped, tag = 'output window, operand 0, single buffered']
    #allocation3 [shape = 's32[1]{0}', space=sflag, size = 0x4, scoped, tag = 'scoped memory for tpu_custom_call.1']
    %14 = vsyncpa [#allocation3], 0
    // Predicated region
    $region2: #{tpu_custom_call.1} parent=1 // pred_check
      _
    $region3: #{tpu_custom_call.1} parent=1 // pred_check_branch
      %16 = sbr.rel (0) target = $region5
    $region4: #{tpu_custom_call.1} parent=1 // pred_region
      _
    $region5: #{tpu_custom_call.1} parent=1 // pred_fallthru
      _
    // Predicated region
    $region6: #{tpu_custom_call.1} parent=1 // pred_check
      _
    $region7: #{tpu_custom_call.1} parent=1 // pred_check_branch
      %18 = sbr.rel (0) target = $region9
    $region8: #{tpu_custom_call.1} parent=1 // pred_region
      _
    $region9: #{tpu_custom_call.1} parent=1 // pred_fallthru
      _
    // Predicated region
    $region10: #{tpu_custom_call.1} parent=1 // pred_check
      _
    $region11: #{tpu_custom_call.1} parent=1 // pred_check_branch
      %20 = sbr.rel (0) target = $region13
    $region12: #{tpu_custom_call.1} parent=1 // pred_region
      _
    $region13: #{tpu_custom_call.1} parent=1 // pred_fallthru
      _
    // Predicated region
    $region14: #{tpu_custom_call.1} parent=1 // pred_check
      _
    $region15: #{tpu_custom_call.1} parent=1 // pred_check_branch
      %22 = sbr.rel (0) target = $region17
    $region16: #{tpu_custom_call.1} parent=1 // pred_region
      _
    $region17: #{tpu_custom_call.1} parent=1 // pred_fallthru
      _
    // Predicated region
    $region18: #{tpu_custom_call.1} parent=1 // pred_check
      _
    $region19: #{tpu_custom_call.1} parent=1 // pred_check_branch
      %24 = sbr.rel (0) target = $region21
    $region20: #{tpu_custom_call.1} parent=1 // pred_region
      _
    $region21: #{tpu_custom_call.1} parent=1 // pred_fallthru
      _
    // Predicated region
    $region22: #{tpu_custom_call.1} parent=1 // pred_check
      _
    $region23: #{tpu_custom_call.1} parent=1 // pred_check_branch
      %26 = sbr.rel (0) target = $region25
    $region24: #{tpu_custom_call.1} parent=1 // pred_region
      _
    $region25: #{tpu_custom_call.1} parent=1 // pred_fallthru
      _
    // Predicated region
    $region26: #{tpu_custom_call.1} parent=1 // pred_check
      _
    $region27: #{tpu_custom_call.1} parent=1 // pred_check_branch
      %28 = sbr.rel (0) target = $region29
    $region28: #{tpu_custom_call.1} parent=1 // pred_region
      _
    $region29: #{tpu_custom_call.1} parent=1 // pred_fallthru
      _
    // Predicated region
    $region30: #{tpu_custom_call.1} parent=1 // pred_check
      _
    $region31: #{tpu_custom_call.1} parent=1 // pred_check_branch
      %30 = sbr.rel (0) target = $region33
    $region32: #{tpu_custom_call.1} parent=1 // pred_region
      _
    $region33: #{tpu_custom_call.1} parent=1 // pred_fallthru
      _
    // Predicated region
    $region34: #{tpu_custom_call.1} parent=1 // pred_check
      _
    $region35: #{tpu_custom_call.1} parent=1 // pred_check_branch
      %32 = sbr.rel (0) target = $region37
    $region36: #{tpu_custom_call.1} parent=1 // pred_region
      _
    $region37: #{tpu_custom_call.1} parent=1 // pred_fallthru
      _
    %v34 = vld [vmem:[%s0] sm:$0xff]
    %v35 = vld [vmem:[%s0 + $0x8] sm:$0xff]
    %v36 = vld [vmem:[%s0 + $0x10] sm:$0xff]
    %v37 = vld [vmem:[%s0 + $0x18] sm:$0xff]
    %v38 = vld [vmem:[%s0 + $0x20] sm:$0xff]
    %v39 = vld [vmem:[%s0 + $0x28] sm:$0xff]
    %v40 = vld [vmem:[%s0 + $0x30] sm:$0xff]
    %v41 = vld [vmem:[%s0 + $0x38] sm:$0xff]
    %v42 = vld [vmem:[%s0 + $0x40] sm:$0xff]
    %v43 = vld [vmem:[%s0 + $0x48] sm:$0xff]
    %v44 = vld [vmem:[%s0 + $0x50] sm:$0xff]
    %v45 = vld [vmem:[%s0 + $0x58] sm:$0xff]
    %v46 = vld [vmem:[%s0 + $0x60] sm:$0xff]
    %v47 = vld [vmem:[%s0 + $0x68] sm:$0xff]
    %v48 = vld [vmem:[%s0 + $0x70] sm:$0xff]
    %v49 = vld [vmem:[%s0 + $0x78] sm:$0xff]
    %v50 = vpack.c.bf16 %v35, %v34
    %v51 = vpack.c.bf16 %v37, %v36
    %v52 = vpack.c.bf16 %v39, %v38
    %v53 = vpack.c.bf16 %v41, %v40
    %v54 = vpack.c.bf16 %v43, %v42
    %v55 = vpack.c.bf16 %v45, %v44
    %v56 = vpack.c.bf16 %v47, %v46
    %v57 = vpack.c.bf16 %v49, %v48
    %v58 = vld [vmem:[%s1] sm:$0xf]
    %v59 = vld [vmem:[%s1 + $0x4] sm:$0xf]
    %v60 = vld [vmem:[%s1 + $0x8] sm:$0xf]
    %v61 = vld [vmem:[%s1 + $0xc] sm:$0xf]
    %v62 = vld [vmem:[%s1 + $0x10] sm:$0xf]
    %v63 = vld [vmem:[%s1 + $0x14] sm:$0xf]
    %v64 = vld [vmem:[%s1 + $0x18] sm:$0xf]
    %v65 = vld [vmem:[%s1 + $0x1c] sm:$0xf]
    %v66 = vld [vmem:[%s2] sm:$0xff]
    %v67 = vld [vmem:[%s2 + $0x8] sm:$0xff]
    %v68 = vld [vmem:[%s2 + $0x10] sm:$0xff]
    %v69 = vld [vmem:[%s2 + $0x18] sm:$0xff]
    %v70 = vld [vmem:[%s2 + $0x20] sm:$0xff]
    %v71 = vld [vmem:[%s2 + $0x28] sm:$0xff]
    %v72 = vld [vmem:[%s2 + $0x30] sm:$0xff]
    %v73 = vld [vmem:[%s2 + $0x38] sm:$0xff]
    %75 = vset.pattern.permute.xlu0 0
    %76 = vperm.xlu0 %75, %v66
    %v77 = vpop.permute.xlu0 %76
    %80 = vset.pattern.permute.xlu0 0
    %81 = vperm.xlu0 %80, %v67
    %v82 = vpop.permute.xlu0 %81
    %85 = vset.pattern.permute.xlu0 0
    %86 = vperm.xlu0 %85, %v68
    %v87 = vpop.permute.xlu0 %86
    %90 = vset.pattern.permute.xlu0 0
    %91 = vperm.xlu0 %90, %v69
    %v92 = vpop.permute.xlu0 %91
    %95 = vset.pattern.permute.xlu0 0
    %96 = vperm.xlu0 %95, %v70
    %v97 = vpop.permute.xlu0 %96
    %100 = vset.pattern.permute.xlu0 0
    %101 = vperm.xlu0 %100, %v71
    %v102 = vpop.permute.xlu0 %101
    %105 = vset.pattern.permute.xlu0 0
    %106 = vperm.xlu0 %105, %v72
    %v107 = vpop.permute.xlu0 %106
    %110 = vset.pattern.permute.xlu0 0
    %111 = vperm.xlu0 %110, %v73
    %v112 = vpop.permute.xlu0 %111
    %v122 = vunpack.c.l.b16 %v58
    %v123 = vunpack.c.l.b16 %v59
    %v124 = vunpack.c.l.b16 %v60
    %v125 = vunpack.c.l.b16 %v61
    %v126 = vunpack.c.l.b16 %v62
    %v127 = vunpack.c.l.b16 %v63
    %v128 = vunpack.c.l.b16 %v64
    %v129 = vunpack.c.l.b16 %v65
    %v130 = vpack.c.b16 %v123, %v122
    %v131 = vpack.c.b16 %v125, %v124
    %v132 = vpack.c.b16 %v127, %v126
    %v133 = vpack.c.b16 %v129, %v128
    %vm134 = vcmask 130048
    %v136 = vsel %vm134, %v130, 0
    %v139 = vsel %vm134, %v131, 0
    %v142 = vsel %vm134, %v132, 0
    %v145 = vsel %vm134, %v133, 0
    %v148 = vsel %vm134, %v50, 0
    %v151 = vsel %vm134, %v51, 0
    %v154 = vsel %vm134, %v52, 0
    %v157 = vsel %vm134, %v53, 0
    %v160 = vsel %vm134, %v54, 0
    %v163 = vsel %vm134, %v55, 0
    %v166 = vsel %vm134, %v56, 0
    %v169 = vsel %vm134, %v57, 0
    %171 = vmatpush.bf16.xpose.msra.mxu0 %v169
    %172 = vmatpush.bf16.xpose.msra.mxu0 %v166
    %173 = vmatpush.bf16.xpose.msra.mxu0 %v163
    %174 = vmatpush.bf16.xpose.msra.mxu0 %v160
    %175 = vmatpush.bf16.xpose.msra.mxu0 %v157
    %176 = vmatpush.bf16.xpose.msra.mxu0 %v154
    %177 = vmatpush.bf16.xpose.msra.mxu0 %v151
    %178 = vmatpush.bf16.xpose.msra.mxu0 %v148
    %179 = vmatmul.bf16.gmra.mxu0 %v136
    %v180 = vpop.f32.mrf.mxu0
    %v181 = vadd.f32 %v77, %v180
    %v182 = vpop.f32.mrf.mxu0
    %v183 = vadd.f32 %v82, %v182
    %184 = vmatmul.bf16.gmra.mxu0 %v139
    %v185 = vpop.f32.mrf.mxu0
    %v186 = vadd.f32 %v87, %v185
    %v187 = vpop.f32.mrf.mxu0
    %v188 = vadd.f32 %v92, %v187
    %189 = vmatmul.bf16.gmra.mxu0 %v142
    %v190 = vpop.f32.mrf.mxu0
    %v191 = vadd.f32 %v97, %v190
    %v192 = vpop.f32.mrf.mxu0
    %v193 = vadd.f32 %v102, %v192
    %194 = vmatmul.bf16.gmra.mxu0 %v145
    %v195 = vpop.f32.mrf.mxu0
    %v196 = vadd.f32 %v107, %v195
    %v197 = vpop.f32.mrf.mxu0
    %v198 = vadd.f32 %v112, %v197
    %199 = vdwg.mxu0
    %v200 = vmax.f32 %v181, 0.0
    %v201 = vmax.f32 %v183, 0.0
    %v202 = vmax.f32 %v186, 0.0
    %v203 = vmax.f32 %v188, 0.0
    %v204 = vmax.f32 %v191, 0.0
    %v205 = vmax.f32 %v193, 0.0
    %v206 = vmax.f32 %v196, 0.0
    %v207 = vmax.f32 %v198, 0.0
    %v208 = vpack.c.bf16 %v201, %v200
    %v209 = vpack.c.bf16 %v203, %v202
    %v210 = vpack.c.bf16 %v205, %v204
    %v211 = vpack.c.bf16 %v207, %v206
    %v212 = vld [vmem:[%s3] sm:$0xf]
    %v213 = vld [vmem:[%s3 + $0x4] sm:$0xf]
    %v214 = vld [vmem:[%s3 + $0x8] sm:$0xf]
    %v215 = vld [vmem:[%s3 + $0xc] sm:$0xf]
    %v216 = vld [vmem:[%s4] sm:$0xff]
    %v217 = vld [vmem:[%s4 + $0x8] sm:$0xff]
    %v218 = vld [vmem:[%s4 + $0x10] sm:$0xff]
    %v219 = vld [vmem:[%s4 + $0x18] sm:$0xff]
    %221 = vset.pattern.permute.xlu0 0
    %222 = vperm.xlu0 %221, %v216
    %v223 = vpop.permute.xlu0 %222
    %226 = vset.pattern.permute.xlu0 0
    %227 = vperm.xlu0 %226, %v217
    %v228 = vpop.permute.xlu0 %227
    %231 = vset.pattern.permute.xlu0 0
    %232 = vperm.xlu0 %231, %v218
    %v233 = vpop.permute.xlu0 %232
    %236 = vset.pattern.permute.xlu0 0
    %237 = vperm.xlu0 %236, %v219
    %v238 = vpop.permute.xlu0 %237
    %v244 = vunpack.c.l.b16 %v212
    %v245 = vunpack.c.l.b16 %v213
    %v246 = vunpack.c.l.b16 %v214
    %v247 = vunpack.c.l.b16 %v215
    %v248 = vpack.c.b16 %v245, %v244
    %v249 = vpack.c.b16 %v247, %v246
    %vm250 = vcmask 523264
    %v252 = vsel %vm250, %v248, 0
    %v255 = vsel %vm250, %v249, 0
    %257 = vmatpush.bf16.msra.mxu0 0
    %258 = vmatpush.bf16.msra.mxu0 0
    %259 = vmatpush.bf16.msra.mxu0 0
    %260 = vmatpush.bf16.msra.mxu0 0
    %261 = vmatpush.bf16.msra.mxu0 %v211
    %262 = vmatpush.bf16.msra.mxu0 %v210
    %263 = vmatpush.bf16.msra.mxu0 %v209
    %264 = vmatpush.bf16.msra.mxu0 %v208
    %265 = vmatmul.bf16.gmra.mxu0 %v252
    %v266 = vpop.f32.mrf.mxu0
    %v267 = vadd.f32 %v223, %v266
    %v268 = vpop.f32.mrf.mxu0
    %v269 = vadd.f32 %v228, %v268
    %270 = vmatmul.bf16.gmra.mxu0 %v255
    %v271 = vpop.f32.mrf.mxu0
    %v272 = vadd.f32 %v233, %v271
    %v273 = vpop.f32.mrf.mxu0
    %v274 = vadd.f32 %v238, %v273
    %275 = vdwg.mxu0
    %v276 = vmax.f32 %v267, 0.0
    %v277 = vmax.f32 %v269, 0.0
    %v278 = vmax.f32 %v272, 0.0
    %v279 = vmax.f32 %v274, 0.0
    %v280 = vpack.c.bf16 %v277, %v276
    %v281 = vpack.c.bf16 %v279, %v278
    %v282 = vld [vmem:[%s5] sm:$0xf]
    %v283 = vld [vmem:[%s6] sm:$0xff]
    %285 = vset.pattern.permute.xlu0 0
    %286 = vperm.xlu0 %285, %v283
    %v287 = vpop.permute.xlu0 %286
    %vm289 = vcmask 261120
    %v291 = vsel %vm289, %v282, 0
    %293 = vmatpush.bf16.msra.mxu0 0
    %294 = vmatpush.bf16.msra.mxu0 0
    %295 = vmatpush.bf16.msra.mxu0 0
    %296 = vmatpush.bf16.msra.mxu0 0
    %297 = vmatpush.bf16.msra.mxu0 0
    %298 = vmatpush.bf16.msra.mxu0 0
    %299 = vmatpush.bf16.msra.mxu0 %v281
    %300 = vmatpush.bf16.msra.mxu0 %v280
    %301 = vmatmul.bf16.gmra.mxu0 %v291
    %v302 = vpop.f32.mrf.mxu0
    %v303 = vadd.f32 %v287, %v302
    %v304 = vpop.f32.mrf.mxu0
    %305 = vdwg.mxu0
    %v306 = vmax.f32 %v303, 0.0
    %v307 = vpack.c.bf16 %v306, %v306
    %v308 = vld [vmem:[%s7] sm:$0x3]
    %v309 = vld [vmem:[%s8] sm:$0xf]
    %311 = vset.pattern.permute.xlu0 0
    %312 = vperm.xlu0 %311, %v309
    %v313 = vpop.permute.xlu0 %312
    %vm315 = vcmask 64512
    %v317 = vsel %vm315, %v308, 0
    %vm319 = vcmask 1043456
    %v321 = vsel %vm319, %v307, 0
    %323 = vmatpush.bf16.msra.mxu0 0
    %324 = vmatpush.bf16.msra.mxu0 0
    %325 = vmatpush.bf16.msra.mxu0 0
    %326 = vmatpush.bf16.msra.mxu0 0
    %327 = vmatpush.bf16.msra.mxu0 0
    %328 = vmatpush.bf16.msra.mxu0 0
    %329 = vmatpush.bf16.msra.mxu0 0
    %330 = vmatpush.bf16.msra.mxu0 %v321
    %331 = vmatmul.bf16.gmra.mxu0 %v317
    %v332 = vpop.f32.mrf.mxu0
    %v333 = vadd.f32 %v313, %v332
    %v334 = vpop.f32.mrf.mxu0
    %335 = vdwg.mxu0
    %v336 = vsel %vm319, %v333, -inf
    %v337 = vrot.slane %v336, 4
    %v338 = vmax.f32 %v336, %v337
    %v339 = vrot.slane %v338, 2
    %v340 = vmax.f32 %v338, %v339
    %v341 = vrot.slane %v340, 1
    %v342 = vmax.f32 %v340, %v341
    %v343 = vsub.f32 %v333, %v342
    %v344 = vmul.f32 %v343, 1.442695
    %v345 = vpow.pop %v344
    %v346 = vsel %vm319, %v345, 0.0
    %v347 = vrot.slane %v346, 4
    %v348 = vadd.f32 %v346, %v347
    %v349 = vrot.slane %v348, 2
    %v350 = vadd.f32 %v348, %v349
    %v351 = vrot.slane %v350, 1
    %v352 = vadd.f32 %v350, %v351
    %v353 = vrcp.pop %v352
    %v354 = vmul.f32 %v352, %v353
    %v355 = vsub.f32 1.0, %v354
    %v356 = vmul.f32 %v353, %v355
    %v357 = vadd.f32 %v353, %v356
    %vm358 = vweird.f32 %v352
    %vm359 = vweird.f32 %v353
    %vm360 = vmor %vm358, %vm359
    %v361 = vsel %vm360, %v353, %v357
    %v362 = vand.u32 2147483647, %v352
    %vm363 = vcmp.eq.f32.partialorder %v362, 8.507059e+37
    %v364 = vand.u32 %v352, 2147483648
    %v365 = vor.u32 1.1754944e-38, %v364
    %v366 = vsel %vm363, %v365, %v361
    %v367 = vmul.f32 %v345, %v366
    %368 = vst [vmem:[#allocation2] sm:$0xf] %v367
    // Predicated region
    $region38: #{tpu_custom_call.1} parent=1 // pred_check
      _
    $region39: #{tpu_custom_call.1} parent=1 // pred_check_branch
      %370 = sbr.rel (0) target = $region41
    $region40: #{tpu_custom_call.1} parent=1 // pred_region
      %372 = vsyncadd [#allocation3], 0
      %s374 = sshll.u32 [#allocation2], 4
      %s375 = int_to_ptr.vmem [resolvable:$true] %s374
      %s376 = sshll.u32 %s9, 4
      %s377 = int_to_ptr.hbm [resolvable:$true] %s376
      %379 = dma.vmem_to_hbm [thread:$0]  %s375, 64, %s377, [#allocation3]
    $region41: #{tpu_custom_call.1} parent=1 // pred_fallthru
      _
    // Predicated region
    $region42: #{tpu_custom_call.1} parent=1 // pred_check
      _
    $region43: #{tpu_custom_call.1} parent=1 // pred_check_branch
      %381 = sbr.rel (0) target = $region45
    $region44: #{tpu_custom_call.1} parent=1 // pred_region
      %383 = dma.done [#allocation3], 64
    $region45: #{tpu_custom_call.1} parent=1 // pred_fallthru
      _
    %384 = vsyncpa [#allocation3], 1

</llo_original>
